<compile_context>
chip_gen: v6e
topology: v6e:2x2x1
jax: 0.10.0
libtpu: 0.0.40
codegen_flags: <defaults>
</compile_context>

<pallas_src>
import jax
import jax.numpy as jnp
import numpy as np
from jax.experimental import pallas as pl
from jax.experimental.pallas import tpu as pltpu


def cube_rnn_kernel(x_ref, wih_ref, whh_ref, b_ref, wfc_ref, bfc_ref, out_ref):
    """Single-invocation kernel (no grid).

    x_ref  : (T*Bp, E)   embedded sequence, time-major, batch padded to Bp
    wih_ref: (E, H)      input->hidden weight (transposed)
    whh_ref: (H, H)      hidden->hidden weight (transposed)
    b_ref  : (1, H)      fused bias b_ih + b_hh
    wfc_ref: (H, Op)     fc weight (transposed, lane-padded to Op=128)
    bfc_ref: (1, Op)     fc bias (-1e30 in padded lanes)
    out_ref: (Bp, Op)    softmax probabilities (lane/sublane dense)
    """
    Bp = out_ref.shape[0]
    T = x_ref.shape[0] // Bp
    H = whh_ref.shape[0]

    # Input projection for ALL timesteps in one MXU pass (off the serial path).
    xp = (jnp.dot(x_ref[...], wih_ref[...], preferred_element_type=jnp.float32)
          + b_ref[...])                                    # (T*Bp, H)

    whh = whh_ref[...]
    h = jnp.zeros((Bp, H), jnp.float32)
    # T is small and static: full unroll gives the scheduler the whole
    # recurrence; only h @ W_hh sits on the serial critical path per step.
    for t in range(T):
        h = jnp.tanh(xp[t * Bp:(t + 1) * Bp, :]
                     + jnp.dot(h, whh, preferred_element_type=jnp.float32))

    logits = (jnp.dot(h, wfc_ref[...], preferred_element_type=jnp.float32)
              + bfc_ref[...])                               # (Bp, Op)
    m = jnp.max(logits, axis=-1, keepdims=True)
    e = jnp.exp(logits - m)                                 # padded lanes -> 0
    denom = jnp.sum(e, axis=-1, keepdims=True)
    out_ref[...] = (e * pl.reciprocal(denom, approx=False)).astype(out_ref.dtype)


def cube_rnn_forward(x_idx, params):
    """x_idx: (B, T) int32 token indices. Returns (B, output_size) float32."""
    emb_table = params["embedding"]                 # (num_pieces, E)
    wih_t = params["w_ih"].T                        # (E, H)
    whh_t = params["w_hh"].T                        # (H, H)
    b = (params["b_ih"] + params["b_hh"]).reshape(1, -1)   # (1, H) fused bias

    B, T = x_idx.shape
    E = emb_table.shape[1]
    H = whh_t.shape[0]
    O = params["w_fc"].shape[0]

    LANE, SUB = 128, 8
    Bp = ((B + SUB - 1) // SUB) * SUB               # sublane-dense batch
    Op = ((O + LANE - 1) // LANE) * LANE            # lane-dense output

    # Lane-pad the fc layer; padded logits get a huge negative bias so their
    # softmax contribution is exactly 0 and real lanes stay correctly normalized.
    wfc_p = jnp.zeros((H, Op), jnp.float32).at[:, :O].set(params["w_fc"].T)
    bfc_p = jnp.full((1, Op), -1e30, jnp.float32).at[:, :O].set(params["b_fc"])

    # Gather the embedding directly into time-major (T, B, E), pad batch to a
    # full sublane group, and flatten to (T*Bp, E) so the input projection is
    # one big matmul inside the kernel (tile-aligned per-step slices: Bp = 8).
    x_tbe = jnp.take(emb_table, x_idx.T, axis=0)            # (T, B, E)
    x_tbe = jnp.pad(x_tbe, ((0, 0), (0, Bp - B), (0, 0)))   # (T, Bp, E)
    x_flat = x_tbe.reshape(T * Bp, E)

    vmem = pltpu.MemorySpace.VMEM
    out_p = pl.pallas_call(
        cube_rnn_kernel,
        out_shape=jax.ShapeDtypeStruct((Bp, Op), jnp.float32),
        in_specs=[pl.BlockSpec(memory_space=vmem)] * 6,   # whole arrays, VMEM-resident
        out_specs=pl.BlockSpec(memory_space=vmem),
    )(x_flat, wih_t, whh_t, b, wfc_p, bfc_p)

    return out_p[:B, :O]


def cube_rnn_reference(x_idx, params):
    """Pure-JAX reference mirroring torch semantics (num_layers=1)."""
    emb = jnp.take(params["embedding"], x_idx, axis=0)   # (B, T, E)
    B, T, _ = emb.shape
    H = params["w_hh"].shape[0]
    h = jnp.zeros((B, H), jnp.float32)
    for t in range(T):
        h = jnp.tanh(emb[:, t, :] @ params["w_ih"].T + params["b_ih"]
                     + h @ params["w_hh"].T + params["b_hh"])
    logits = h @ params["w_fc"].T + params["b_fc"]
    return jax.nn.softmax(logits, axis=-1)


def init_params(key, num_pieces, embedding_dim, hidden_size, output_size):
    ks = jax.random.split(key, 7)
    bound = 1.0 / np.sqrt(hidden_size)
    return {
        "embedding": jax.random.normal(ks[0], (num_pieces, embedding_dim), jnp.float32),
        "w_ih": jax.random.uniform(ks[1], (hidden_size, embedding_dim), jnp.float32,
                                   -bound, bound),
        "w_hh": jax.random.uniform(ks[2], (hidden_size, hidden_size), jnp.float32,
                                   -bound, bound),
        "b_ih": jax.random.uniform(ks[3], (hidden_size,), jnp.float32, -bound, bound),
        "b_hh": jax.random.uniform(ks[4], (hidden_size,), jnp.float32, -bound, bound),
        "w_fc": jax.random.uniform(ks[5], (output_size, hidden_size), jnp.float32,
                                   -bound, bound),
        "b_fc": jax.random.uniform(ks[6], (output_size,), jnp.float32, -bound, bound),
    }


if __name__ == "__main__":
    # Small, module-consistent shapes.
    num_pieces, embedding_dim, hidden_size, output_size = 12, 16, 32, 12
    batch, seq = 2, 8

    key = jax.random.PRNGKey(0)
    k_par, k_idx = jax.random.split(key)
    params = init_params(k_par, num_pieces, embedding_dim, hidden_size, output_size)
    x_idx = jax.random.randint(k_idx, (batch, seq), 0, num_pieces, dtype=jnp.int32)

    out = cube_rnn_forward(x_idx, params)
    out = jax.block_until_ready(out)

    ref = cube_rnn_reference(x_idx, params)
    np.testing.assert_allclose(np.asarray(out), np.asarray(ref), rtol=1e-5, atol=1e-5)
    assert out.shape == (batch, output_size)
    # Softmax rows sum to 1.
    np.testing.assert_allclose(np.asarray(out).sum(-1), np.ones(batch),
                               rtol=1e-5, atol=1e-5)

    print("KERNEL_OK")
</pallas_src>

<mosaic_0001>
module attributes {stable_mosaic.version = 11 : i64} {
  func.func @cube_rnn_kernel(%arg0: memref<64x16xf32, #tpu.memory_space<vmem>>, %arg1: memref<16x32xf32, #tpu.memory_space<vmem>>, %arg2: memref<32x32xf32, #tpu.memory_space<vmem>>, %arg3: memref<1x32xf32, #tpu.memory_space<vmem>>, %arg4: memref<32x128xf32, #tpu.memory_space<vmem>>, %arg5: memref<1x128xf32, #tpu.memory_space<vmem>>, %arg6: memref<8x128xf32, #tpu.memory_space<vmem>>) attributes {dimension_semantics = [], scalar_prefetch = 0 : i64, scratch_operands = 0 : i64, tpu.core_type = #tpu.core_type<tc>} {
    %c0 = arith.constant 0 : index
    %c0_0 = arith.constant 0 : index
    %0 = vector.load %arg0[%c0, %c0_0] : memref<64x16xf32, #tpu.memory_space<vmem>>, vector<64x16xf32>
    %c0_1 = arith.constant 0 : index
    %c0_2 = arith.constant 0 : index
    %1 = vector.load %arg1[%c0_1, %c0_2] : memref<16x32xf32, #tpu.memory_space<vmem>>, vector<16x32xf32>
    %cst = arith.constant dense<0.000000e+00> : vector<64x32xf32>
    %2 = tpu.matmul %0, %1, %cst {dimension_numbers = #tpu.dot_dimension_numbers<[1], [0], [0], [1], [0, 0, 1, 1], [], []>} : vector<64x16xf32>, vector<16x32xf32>, vector<64x32xf32> -> vector<64x32xf32>
    %c0_3 = arith.constant 0 : index
    %c0_4 = arith.constant 0 : index
    %3 = vector.load %arg3[%c0_3, %c0_4] : memref<1x32xf32, #tpu.memory_space<vmem>>, vector<1x32xf32>
    %4 = vector.broadcast %3 : vector<1x32xf32> to vector<64x32xf32>
    %5 = arith.addf %2, %4 : vector<64x32xf32>
    %c0_5 = arith.constant 0 : index
    %c0_6 = arith.constant 0 : index
    %6 = vector.load %arg2[%c0_5, %c0_6] : memref<32x32xf32, #tpu.memory_space<vmem>>, vector<32x32xf32>
    %cst_7 = arith.constant 0.000000e+00 : f32
    %7 = vector.broadcast %cst_7 : f32 to vector<8x32xf32>
    %8 = vector.extract_strided_slice %5 {offsets = [0, 0], sizes = [8, 32], strides = [1, 1]} : vector<64x32xf32> to vector<8x32xf32>
    %cst_8 = arith.constant dense<0.000000e+00> : vector<8x32xf32>
    %9 = tpu.matmul %7, %6, %cst_8 {dimension_numbers = #tpu.dot_dimension_numbers<[1], [0], [0], [1], [0, 0, 1, 1], [], []>} : vector<8x32xf32>, vector<32x32xf32>, vector<8x32xf32> -> vector<8x32xf32>
    %10 = arith.addf %8, %9 : vector<8x32xf32>
    %11 = math.tanh %10 : vector<8x32xf32>
    %12 = vector.extract_strided_slice %5 {offsets = [8, 0], sizes = [8, 32], strides = [1, 1]} : vector<64x32xf32> to vector<8x32xf32>
    %cst_9 = arith.constant dense<0.000000e+00> : vector<8x32xf32>
    %13 = tpu.matmul %11, %6, %cst_9 {dimension_numbers = #tpu.dot_dimension_numbers<[1], [0], [0], [1], [0, 0, 1, 1], [], []>} : vector<8x32xf32>, vector<32x32xf32>, vector<8x32xf32> -> vector<8x32xf32>
    %14 = arith.addf %12, %13 : vector<8x32xf32>
    %15 = math.tanh %14 : vector<8x32xf32>
    %16 = vector.extract_strided_slice %5 {offsets = [16, 0], sizes = [8, 32], strides = [1, 1]} : vector<64x32xf32> to vector<8x32xf32>
    %cst_10 = arith.constant dense<0.000000e+00> : vector<8x32xf32>
    %17 = tpu.matmul %15, %6, %cst_10 {dimension_numbers = #tpu.dot_dimension_numbers<[1], [0], [0], [1], [0, 0, 1, 1], [], []>} : vector<8x32xf32>, vector<32x32xf32>, vector<8x32xf32> -> vector<8x32xf32>
    %18 = arith.addf %16, %17 : vector<8x32xf32>
    %19 = math.tanh %18 : vector<8x32xf32>
    %20 = vector.extract_strided_slice %5 {offsets = [24, 0], sizes = [8, 32], strides = [1, 1]} : vector<64x32xf32> to vector<8x32xf32>
    %cst_11 = arith.constant dense<0.000000e+00> : vector<8x32xf32>
    %21 = tpu.matmul %19, %6, %cst_11 {dimension_numbers = #tpu.dot_dimension_numbers<[1], [0], [0], [1], [0, 0, 1, 1], [], []>} : vector<8x32xf32>, vector<32x32xf32>, vector<8x32xf32> -> vector<8x32xf32>
    %22 = arith.addf %20, %21 : vector<8x32xf32>
    %23 = math.tanh %22 : vector<8x32xf32>
    %24 = vector.extract_strided_slice %5 {offsets = [32, 0], sizes = [8, 32], strides = [1, 1]} : vector<64x32xf32> to vector<8x32xf32>
    %cst_12 = arith.constant dense<0.000000e+00> : vector<8x32xf32>
    %25 = tpu.matmul %23, %6, %cst_12 {dimension_numbers = #tpu.dot_dimension_numbers<[1], [0], [0], [1], [0, 0, 1, 1], [], []>} : vector<8x32xf32>, vector<32x32xf32>, vector<8x32xf32> -> vector<8x32xf32>
    %26 = arith.addf %24, %25 : vector<8x32xf32>
    %27 = math.tanh %26 : vector<8x32xf32>
    %28 = vector.extract_strided_slice %5 {offsets = [40, 0], sizes = [8, 32], strides = [1, 1]} : vector<64x32xf32> to vector<8x32xf32>
    %cst_13 = arith.constant dense<0.000000e+00> : vector<8x32xf32>
    %29 = tpu.matmul %27, %6, %cst_13 {dimension_numbers = #tpu.dot_dimension_numbers<[1], [0], [0], [1], [0, 0, 1, 1], [], []>} : vector<8x32xf32>, vector<32x32xf32>, vector<8x32xf32> -> vector<8x32xf32>
    %30 = arith.addf %28, %29 : vector<8x32xf32>
    %31 = math.tanh %30 : vector<8x32xf32>
    %32 = vector.extract_strided_slice %5 {offsets = [48, 0], sizes = [8, 32], strides = [1, 1]} : vector<64x32xf32> to vector<8x32xf32>
    %cst_14 = arith.constant dense<0.000000e+00> : vector<8x32xf32>
    %33 = tpu.matmul %31, %6, %cst_14 {dimension_numbers = #tpu.dot_dimension_numbers<[1], [0], [0], [1], [0, 0, 1, 1], [], []>} : vector<8x32xf32>, vector<32x32xf32>, vector<8x32xf32> -> vector<8x32xf32>
    %34 = arith.addf %32, %33 : vector<8x32xf32>
    %35 = math.tanh %34 : vector<8x32xf32>
    %36 = vector.extract_strided_slice %5 {offsets = [56, 0], sizes = [8, 32], strides = [1, 1]} : vector<64x32xf32> to vector<8x32xf32>
    %cst_15 = arith.constant dense<0.000000e+00> : vector<8x32xf32>
    %37 = tpu.matmul %35, %6, %cst_15 {dimension_numbers = #tpu.dot_dimension_numbers<[1], [0], [0], [1], [0, 0, 1, 1], [], []>} : vector<8x32xf32>, vector<32x32xf32>, vector<8x32xf32> -> vector<8x32xf32>
    %38 = arith.addf %36, %37 : vector<8x32xf32>
    %39 = math.tanh %38 : vector<8x32xf32>
    %c0_16 = arith.constant 0 : index
    %c0_17 = arith.constant 0 : index
    %40 = vector.load %arg4[%c0_16, %c0_17] : memref<32x128xf32, #tpu.memory_space<vmem>>, vector<32x128xf32>
    %cst_18 = arith.constant dense<0.000000e+00> : vector<8x128xf32>
    %41 = tpu.matmul %39, %40, %cst_18 {dimension_numbers = #tpu.dot_dimension_numbers<[1], [0], [0], [1], [0, 0, 1, 1], [], []>} : vector<8x32xf32>, vector<32x128xf32>, vector<8x128xf32> -> vector<8x128xf32>
    %c0_19 = arith.constant 0 : index
    %c0_20 = arith.constant 0 : index
    %42 = vector.load %arg5[%c0_19, %c0_20] : memref<1x128xf32, #tpu.memory_space<vmem>>, vector<1x128xf32>
    %43 = vector.broadcast %42 : vector<1x128xf32> to vector<8x128xf32>
    %44 = arith.addf %41, %43 : vector<8x128xf32>
    %cst_21 = arith.constant dense<0xFF800000> : vector<8xf32>
    %45 = vector.multi_reduction <maximumf>, %44, %cst_21 [1] : vector<8x128xf32> to vector<8xf32>
    %46 = vector.shape_cast %45 : vector<8xf32> to vector<8x1xf32>
    %47 = vector.broadcast %46 : vector<8x1xf32> to vector<8x128xf32>
    %48 = arith.subf %44, %47 : vector<8x128xf32>
    %49 = math.exp %48 : vector<8x128xf32>
    %cst_22 = arith.constant dense<0.000000e+00> : vector<8xf32>
    %50 = vector.multi_reduction <add>, %49, %cst_22 [1] : vector<8x128xf32> to vector<8xf32>
    %51 = vector.shape_cast %50 : vector<8xf32> to vector<8x1xf32>
    %52 = tpu.reciprocal %51 : vector<8x1xf32> -> vector<8x1xf32>
    %53 = vector.broadcast %52 : vector<8x1xf32> to vector<8x128xf32>
    %54 = arith.mulf %49, %53 : vector<8x128xf32>
    %c0_23 = arith.constant 0 : index
    %c0_24 = arith.constant 0 : index
    %55 = vector.load %arg6[%c0_23, %c0_24] : memref<8x128xf32, #tpu.memory_space<vmem>>, vector<8x128xf32>
    tpu.vector_store %arg6[%c0_23, %c0_24], %54 {strides = array<i32>} : memref<8x128xf32, #tpu.memory_space<vmem>>, vector<8x128xf32>,
    return
  }
}

</mosaic_0001>

<llo_original>
// kernel: tpu_custom_call.1
$region0: #{tpu_custom_call.1}
  #allocation0 [shape = 'u32[]', space=smem, size = 0x4, offset = 0x4, fixed_abs, tag = 'smem constant byte address 0x4 - core index']
  #allocation1 [shape = 'u32[144,128]{1,0:T(1,128)}', space=vmem, size = 0x12000, scoped, tag = 'internal scratch']
  %s0 = inlined_call_operand.vmem [shape: f32[64,16], index: 0, kind: input, shape index: {}]
  %s1 = inlined_call_operand.vmem [shape: f32[16,32], index: 1, kind: input, shape index: {}]
  %s2 = inlined_call_operand.vmem [shape: f32[32,32], index: 2, kind: input, shape index: {}]
  %s3 = inlined_call_operand.vmem [shape: f32[1,32], index: 3, kind: input, shape index: {}]
  %s4 = inlined_call_operand.vmem [shape: f32[32,128], index: 4, kind: input, shape index: {}]
  %s5 = inlined_call_operand.vmem [shape: f32[1,128], index: 5, kind: input, shape index: {}]
  %s6 = inlined_call_operand.hbm [shape: f32[8,128], index: 6, kind: output, shape index: {}]
  %s7 = sld [smem:[#allocation0]]
  $region34: #{tpu_custom_call.1} parent=0
    _
  %s9 = ssub.s32 1, %s7
  %s10 = scalar_select 0, %s9, %s7
  $region1: #{tpu_custom_call.1} parent=0
    #allocation2 [shape = 'u8[4096]{0}', space=vmem, size = 0x1000, scoped, tag = 'output window, operand 0, single buffered']
    #allocation3 [shape = 's32[1]{0}', space=sflag, size = 0x4, scoped, tag = 'scoped memory for tpu_custom_call.1']
    %11 = vsyncpa [#allocation3], 0
    // Predicated region
    $region2: #{tpu_custom_call.1} parent=1 // pred_check
      _
    $region3: #{tpu_custom_call.1} parent=1 // pred_check_branch
      %13 = sbr.rel (0) target = $region5
    $region4: #{tpu_custom_call.1} parent=1 // pred_region
      _
    $region5: #{tpu_custom_call.1} parent=1 // pred_fallthru
      _
    // Predicated region
    $region6: #{tpu_custom_call.1} parent=1 // pred_check
      _
    $region7: #{tpu_custom_call.1} parent=1 // pred_check_branch
      %15 = sbr.rel (0) target = $region9
    $region8: #{tpu_custom_call.1} parent=1 // pred_region
      _
    $region9: #{tpu_custom_call.1} parent=1 // pred_fallthru
      _
    // Predicated region
    $region10: #{tpu_custom_call.1} parent=1 // pred_check
      _
    $region11: #{tpu_custom_call.1} parent=1 // pred_check_branch
      %17 = sbr.rel (0) target = $region13
    $region12: #{tpu_custom_call.1} parent=1 // pred_region
      _
    $region13: #{tpu_custom_call.1} parent=1 // pred_fallthru
      _
    // Predicated region
    $region14: #{tpu_custom_call.1} parent=1 // pred_check
      _
    $region15: #{tpu_custom_call.1} parent=1 // pred_check_branch
      %19 = sbr.rel (0) target = $region17
    $region16: #{tpu_custom_call.1} parent=1 // pred_region
      _
    $region17: #{tpu_custom_call.1} parent=1 // pred_fallthru
      _
    // Predicated region
    $region18: #{tpu_custom_call.1} parent=1 // pred_check
      _
    $region19: #{tpu_custom_call.1} parent=1 // pred_check_branch
      %21 = sbr.rel (0) target = $region21
    $region20: #{tpu_custom_call.1} parent=1 // pred_region
      _
    $region21: #{tpu_custom_call.1} parent=1 // pred_fallthru
      _
    // Predicated region
    $region22: #{tpu_custom_call.1} parent=1 // pred_check
      _
    $region23: #{tpu_custom_call.1} parent=1 // pred_check_branch
      %23 = sbr.rel (0) target = $region25
    $region24: #{tpu_custom_call.1} parent=1 // pred_region
      _
    $region25: #{tpu_custom_call.1} parent=1 // pred_fallthru
      _
    %v24 = vld [vmem:[%s0] sm:$0xff]
    %v25 = vld [vmem:[%s0 + $0x8] sm:$0xff]
    %v26 = vld [vmem:[%s0 + $0x10] sm:$0xff]
    %v27 = vld [vmem:[%s0 + $0x18] sm:$0xff]
    %v28 = vld [vmem:[%s0 + $0x20] sm:$0xff]
    %v29 = vld [vmem:[%s0 + $0x28] sm:$0xff]
    %v30 = vld [vmem:[%s0 + $0x30] sm:$0xff]
    %v31 = vld [vmem:[%s0 + $0x38] sm:$0xff]
    %v32 = vld [vmem:[%s1] sm:$0xff]
    %v33 = vld [vmem:[%s1 + $0x8] sm:$0xff]
    %v34 = vld [vmem:[%s3] sm:$0x1]
    %v36 = vlaneseq
    %v37 = vshrl.u32 %v36, 7
    %v38 = vsub.s32 0, %v37
    %v39 = vrot.slane %v34, %v38
    %vm41 = vcmask 130048
    %v43 = vsel %vm41, %v24, 0
    %v46 = vsel %vm41, %v25, 0
    %v49 = vsel %vm41, %v26, 0
    %v52 = vsel %vm41, %v27, 0
    %v55 = vsel %vm41, %v28, 0
    %v58 = vsel %vm41, %v29, 0
    %v61 = vsel %vm41, %v30, 0
    %v64 = vsel %vm41, %v31, 0
    %66 = vmatprep.subr.mxu0 0.0
    %67 = vmatpush1.msra.mxu0 0.0
    %68 = vmatprep.subr.mxu0 0.0
    %69 = vmatpush1.msra.mxu0 0.0
    %70 = vmatprep.subr.mxu0 0.0
    %71 = vmatpush1.msra.mxu0 0.0
    %72 = vmatprep.subr.mxu0 0.0
    %73 = vmatpush1.msra.mxu0 0.0
    %74 = vmatprep.subr.mxu0 0.0
    %75 = vmatpush1.msra.mxu0 0.0
    %76 = vmatprep.subr.mxu0 0.0
    %77 = vmatpush1.msra.mxu0 0.0
    %78 = vmatprep.subr.mxu0 0.0
    %79 = vmatpush1.msra.mxu0 0.0
    %80 = vmatprep.subr.mxu0 0.0
    %81 = vmatpush1.msra.mxu0 0.0
    %82 = vmatprep.subr.mxu0 0.0
    %83 = vmatpush1.msra.mxu0 0.0
    %84 = vmatprep.subr.mxu0 0.0
    %85 = vmatpush1.msra.mxu0 0.0
    %86 = vmatprep.subr.mxu0 0.0
    %87 = vmatpush1.msra.mxu0 0.0
    %88 = vmatprep.subr.mxu0 0.0
    %89 = vmatpush1.msra.mxu0 0.0
    %90 = vmatprep.subr.mxu0 0.0
    %91 = vmatpush1.msra.mxu0 0.0
    %92 = vmatprep.subr.mxu0 0.0
    %93 = vmatpush1.msra.mxu0 0.0
    %94 = vmatprep.subr.mxu0 0.0
    %95 = vmatpush1.msra.mxu0 %v33
    %96 = vmatprep.subr.mxu0 0.0
    %97 = vmatpush1.msra.mxu0 %v32
    %98 = vmatprep.subr.mxu0 0.0
    %99 = vmatpush2.msra.mxu0 0.0
    %100 = vmatprep.subr.mxu0 0.0
    %101 = vmatpush2.msra.mxu0 0.0
    %102 = vmatprep.subr.mxu0 0.0
    %103 = vmatpush2.msra.mxu0 0.0
    %104 = vmatprep.subr.mxu0 0.0
    %105 = vmatpush2.msra.mxu0 0.0
    %106 = vmatprep.subr.mxu0 0.0
    %107 = vmatpush2.msra.mxu0 0.0
    %108 = vmatprep.subr.mxu0 0.0
    %109 = vmatpush2.msra.mxu0 0.0
    %110 = vmatprep.subr.mxu0 0.0
    %111 = vmatpush2.msra.mxu0 0.0
    %112 = vmatprep.subr.mxu0 0.0
    %113 = vmatpush2.msra.mxu0 0.0
    %114 = vmatprep.subr.mxu0 0.0
    %115 = vmatpush2.msra.mxu0 0.0
    %116 = vmatprep.subr.mxu0 0.0
    %117 = vmatpush2.msra.mxu0 0.0
    %118 = vmatprep.subr.mxu0 0.0
    %119 = vmatpush2.msra.mxu0 0.0
    %120 = vmatprep.subr.mxu0 0.0
    %121 = vmatpush2.msra.mxu0 0.0
    %122 = vmatprep.subr.mxu0 0.0
    %123 = vmatpush2.msra.mxu0 0.0
    %124 = vmatprep.subr.mxu0 0.0
    %125 = vmatpush2.msra.mxu0 0.0
    %126 = vmatprep.subr.mxu0 0.0
    %127 = vmatpush2.msra.mxu0 0.0
    %128 = vmatprep.subr.mxu0 0.0
    %129 = vmatpush2.msra.mxu0 0.0
    %130 = vmatprep.mubr.f32.mxu0 0.0
    %131 = vmatmul.mubr.f32.gmra.mxu0 %v43
    %v132 = vpop.f32.mrf.mxu0
    %v133 = vadd.f32 %v39, %v132
    %v134 = vpop.f32.mrf.mxu0
    %135 = vmatprep.mubr.f32.mxu0 0.0
    %136 = vmatmul.mubr.f32.gmra.mxu0 %v46
    %v137 = vpop.f32.mrf.mxu0
    %v138 = vadd.f32 %v39, %v137
    %v139 = vpop.f32.mrf.mxu0
    %140 = vmatprep.mubr.f32.mxu0 0.0
    %141 = vmatmul.mubr.f32.gmra.mxu0 %v49
    %v142 = vpop.f32.mrf.mxu0
    %v143 = vadd.f32 %v39, %v142
    %v144 = vpop.f32.mrf.mxu0
    %145 = vmatprep.mubr.f32.mxu0 0.0
    %146 = vmatmul.mubr.f32.gmra.mxu0 %v52
    %v147 = vpop.f32.mrf.mxu0
    %v148 = vadd.f32 %v39, %v147
    %v149 = vpop.f32.mrf.mxu0
    %150 = vmatprep.mubr.f32.mxu0 0.0
    %151 = vmatmul.mubr.f32.gmra.mxu0 %v55
    %v152 = vpop.f32.mrf.mxu0
    %v153 = vadd.f32 %v39, %v152
    %v154 = vpop.f32.mrf.mxu0
    %155 = vmatprep.mubr.f32.mxu0 0.0
    %156 = vmatmul.mubr.f32.gmra.mxu0 %v58
    %v157 = vpop.f32.mrf.mxu0
    %v158 = vadd.f32 %v39, %v157
    %v159 = vpop.f32.mrf.mxu0
    %160 = vmatprep.mubr.f32.mxu0 0.0
    %161 = vmatmul.mubr.f32.gmra.mxu0 %v61
    %v162 = vpop.f32.mrf.mxu0
    %v163 = vadd.f32 %v39, %v162
    %v164 = vpop.f32.mrf.mxu0
    %165 = vmatprep.mubr.f32.mxu0 0.0
    %166 = vmatmul.mubr.f32.gmra.mxu0 %v64
    %v167 = vpop.f32.mrf.mxu0
    %v168 = vadd.f32 %v39, %v167
    %v169 = vpop.f32.mrf.mxu0
    %170 = vdwg.mxu0
    %v171 = vld [vmem:[%s2] sm:$0xff]
    %v172 = vld [vmem:[%s2 + $0x8] sm:$0xff]
    %v173 = vld [vmem:[%s2 + $0x10] sm:$0xff]
    %v174 = vld [vmem:[%s2 + $0x18] sm:$0xff]
    %vm175 = vcmask 261120
    %v177 = vsel %vm175, 0.0, 0
    %179 = vmatprep.subr.mxu0 0.0
    %180 = vmatpush1.msra.mxu0 0.0
    %181 = vmatprep.subr.mxu0 0.0
    %182 = vmatpush1.msra.mxu0 0.0
    %183 = vmatprep.subr.mxu0 0.0
    %184 = vmatpush1.msra.mxu0 0.0
    %185 = vmatprep.subr.mxu0 0.0
    %186 = vmatpush1.msra.mxu0 0.0
    %187 = vmatprep.subr.mxu0 0.0
    %188 = vmatpush1.msra.mxu0 0.0
    %189 = vmatprep.subr.mxu0 0.0
    %190 = vmatpush1.msra.mxu0 0.0
    %191 = vmatprep.subr.mxu0 0.0
    %192 = vmatpush1.msra.mxu0 0.0
    %193 = vmatprep.subr.mxu0 0.0
    %194 = vmatpush1.msra.mxu0 0.0
    %195 = vmatprep.subr.mxu0 0.0
    %196 = vmatpush1.msra.mxu0 0.0
    %197 = vmatprep.subr.mxu0 0.0
    %198 = vmatpush1.msra.mxu0 0.0
    %199 = vmatprep.subr.mxu0 0.0
    %200 = vmatpush1.msra.mxu0 0.0
    %201 = vmatprep.subr.mxu0 0.0
    %202 = vmatpush1.msra.mxu0 0.0
    %203 = vmatprep.subr.mxu0 0.0
    %204 = vmatpush1.msra.mxu0 %v174
    %205 = vmatprep.subr.mxu0 0.0
    %206 = vmatpush1.msra.mxu0 %v173
    %207 = vmatprep.subr.mxu0 0.0
    %208 = vmatpush1.msra.mxu0 %v172
    %209 = vmatprep.subr.mxu0 0.0
    %210 = vmatpush1.msra.mxu0 %v171
    %211 = vmatprep.subr.mxu0 0.0
    %212 = vmatpush2.msra.mxu0 0.0
    %213 = vmatprep.subr.mxu0 0.0
    %214 = vmatpush2.msra.mxu0 0.0
    %215 = vmatprep.subr.mxu0 0.0
    %216 = vmatpush2.msra.mxu0 0.0
    %217 = vmatprep.subr.mxu0 0.0
    %218 = vmatpush2.msra.mxu0 0.0
    %219 = vmatprep.subr.mxu0 0.0
    %220 = vmatpush2.msra.mxu0 0.0
    %221 = vmatprep.subr.mxu0 0.0
    %222 = vmatpush2.msra.mxu0 0.0
    %223 = vmatprep.subr.mxu0 0.0
    %224 = vmatpush2.msra.mxu0 0.0
    %225 = vmatprep.subr.mxu0 0.0
    %226 = vmatpush2.msra.mxu0 0.0
    %227 = vmatprep.subr.mxu0 0.0
    %228 = vmatpush2.msra.mxu0 0.0
    %229 = vmatprep.subr.mxu0 0.0
    %230 = vmatpush2.msra.mxu0 0.0
    %231 = vmatprep.subr.mxu0 0.0
    %232 = vmatpush2.msra.mxu0 0.0
    %233 = vmatprep.subr.mxu0 0.0
    %234 = vmatpush2.msra.mxu0 0.0
    %235 = vmatprep.subr.mxu0 0.0
    %236 = vmatpush2.msra.mxu0 0.0
    %237 = vmatprep.subr.mxu0 0.0
    %238 = vmatpush2.msra.mxu0 0.0
    %239 = vmatprep.subr.mxu0 0.0
    %240 = vmatpush2.msra.mxu0 0.0
    %241 = vmatprep.subr.mxu0 0.0
    %242 = vmatpush2.msra.mxu0 0.0
    %243 = vmatprep.mubr.f32.mxu0 0.0
    %244 = vmatmul.mubr.f32.gmra.mxu0 %v177
    %v245 = vpop.f32.mrf.mxu0
    %v246 = vadd.f32 0.0, %v245
    %v247 = vpop.f32.mrf.mxu0
    %248 = vdwg.mxu0
    %v249 = vadd.f32 %v133, %v246
    %v250 = vtanh.pop %v249
    %v252 = vsel %vm175, %v250, 0
    %254 = vmatprep.subr.mxu0 0.0
    %255 = vmatpush1.msra.mxu0 0.0
    %256 = vmatprep.subr.mxu0 0.0
    %257 = vmatpush1.msra.mxu0 0.0
    %258 = vmatprep.subr.mxu0 0.0
    %259 = vmatpush1.msra.mxu0 0.0
    %260 = vmatprep.subr.mxu0 0.0
    %261 = vmatpush1.msra.mxu0 0.0
    %262 = vmatprep.subr.mxu0 0.0
    %263 = vmatpush1.msra.mxu0 0.0
    %264 = vmatprep.subr.mxu0 0.0
    %265 = vmatpush1.msra.mxu0 0.0
    %266 = vmatprep.subr.mxu0 0.0
    %267 = vmatpush1.msra.mxu0 0.0
    %268 = vmatprep.subr.mxu0 0.0
    %269 = vmatpush1.msra.mxu0 0.0
    %270 = vmatprep.subr.mxu0 0.0
    %271 = vmatpush1.msra.mxu0 0.0
    %272 = vmatprep.subr.mxu0 0.0
    %273 = vmatpush1.msra.mxu0 0.0
    %274 = vmatprep.subr.mxu0 0.0
    %275 = vmatpush1.msra.mxu0 0.0
    %276 = vmatprep.subr.mxu0 0.0
    %277 = vmatpush1.msra.mxu0 0.0
    %278 = vmatprep.subr.mxu0 0.0
    %279 = vmatpush1.msra.mxu0 %v174
    %280 = vmatprep.subr.mxu0 0.0
    %281 = vmatpush1.msra.mxu0 %v173
    %282 = vmatprep.subr.mxu0 0.0
    %283 = vmatpush1.msra.mxu0 %v172
    %284 = vmatprep.subr.mxu0 0.0
    %285 = vmatpush1.msra.mxu0 %v171
    %286 = vmatprep.subr.mxu0 0.0
    %287 = vmatpush2.msra.mxu0 0.0
    %288 = vmatprep.subr.mxu0 0.0
    %289 = vmatpush2.msra.mxu0 0.0
    %290 = vmatprep.subr.mxu0 0.0
    %291 = vmatpush2.msra.mxu0 0.0
    %292 = vmatprep.subr.mxu0 0.0
    %293 = vmatpush2.msra.mxu0 0.0
    %294 = vmatprep.subr.mxu0 0.0
    %295 = vmatpush2.msra.mxu0 0.0
    %296 = vmatprep.subr.mxu0 0.0
    %297 = vmatpush2.msra.mxu0 0.0
    %298 = vmatprep.subr.mxu0 0.0
    %299 = vmatpush2.msra.mxu0 0.0
    %300 = vmatprep.subr.mxu0 0.0
    %301 = vmatpush2.msra.mxu0 0.0
    %302 = vmatprep.subr.mxu0 0.0
    %303 = vmatpush2.msra.mxu0 0.0
    %304 = vmatprep.subr.mxu0 0.0
    %305 = vmatpush2.msra.mxu0 0.0
    %306 = vmatprep.subr.mxu0 0.0
    %307 = vmatpush2.msra.mxu0 0.0
    %308 = vmatprep.subr.mxu0 0.0
    %309 = vmatpush2.msra.mxu0 0.0
    %310 = vmatprep.subr.mxu0 0.0
    %311 = vmatpush2.msra.mxu0 0.0
    %312 = vmatprep.subr.mxu0 0.0
    %313 = vmatpush2.msra.mxu0 0.0
    %314 = vmatprep.subr.mxu0 0.0
    %315 = vmatpush2.msra.mxu0 0.0
    %316 = vmatprep.subr.mxu0 0.0
    %317 = vmatpush2.msra.mxu0 0.0
    %318 = vmatprep.mubr.f32.mxu0 0.0
    %319 = vmatmul.mubr.f32.gmra.mxu0 %v252
    %v320 = vpop.f32.mrf.mxu0
    %v321 = vadd.f32 0.0, %v320
    %v322 = vpop.f32.mrf.mxu0
    %323 = vdwg.mxu0
    %v324 = vadd.f32 %v138, %v321
    %v325 = vtanh.pop %v324
    %v327 = vsel %vm175, %v325, 0
    %329 = vmatprep.subr.mxu0 0.0
    %330 = vmatpush1.msra.mxu0 0.0
    %331 = vmatprep.subr.mxu0 0.0
    %332 = vmatpush1.msra.mxu0 0.0
    %333 = vmatprep.subr.mxu0 0.0
    %334 = vmatpush1.msra.mxu0 0.0
    %335 = vmatprep.subr.mxu0 0.0
    %336 = vmatpush1.msra.mxu0 0.0
    %337 = vmatprep.subr.mxu0 0.0
    %338 = vmatpush1.msra.mxu0 0.0
    %339 = vmatprep.subr.mxu0 0.0
    %340 = vmatpush1.msra.mxu0 0.0
    %341 = vmatprep.subr.mxu0 0.0
    %342 = vmatpush1.msra.mxu0 0.0
    %343 = vmatprep.subr.mxu0 0.0
    %344 = vmatpush1.msra.mxu0 0.0
    %345 = vmatprep.subr.mxu0 0.0
    %346 = vmatpush1.msra.mxu0 0.0
    %347 = vmatprep.subr.mxu0 0.0
    %348 = vmatpush1.msra.mxu0 0.0
    %349 = vmatprep.subr.mxu0 0.0
    %350 = vmatpush1.msra.mxu0 0.0
    %351 = vmatprep.subr.mxu0 0.0
    %352 = vmatpush1.msra.mxu0 0.0
    %353 = vmatprep.subr.mxu0 0.0
    %354 = vmatpush1.msra.mxu0 %v174
    %355 = vmatprep.subr.mxu0 0.0
    %356 = vmatpush1.msra.mxu0 %v173
    %357 = vmatprep.subr.mxu0 0.0
    %358 = vmatpush1.msra.mxu0 %v172
    %359 = vmatprep.subr.mxu0 0.0
    %360 = vmatpush1.msra.mxu0 %v171
    %361 = vmatprep.subr.mxu0 0.0
    %362 = vmatpush2.msra.mxu0 0.0
    %363 = vmatprep.subr.mxu0 0.0
    %364 = vmatpush2.msra.mxu0 0.0
    %365 = vmatprep.subr.mxu0 0.0
    %366 = vmatpush2.msra.mxu0 0.0
    %367 = vmatprep.subr.mxu0 0.0
    %368 = vmatpush2.msra.mxu0 0.0
    %369 = vmatprep.subr.mxu0 0.0
    %370 = vmatpush2.msra.mxu0 0.0
    %371 = vmatprep.subr.mxu0 0.0
    %372 = vmatpush2.msra.mxu0 0.0
    %373 = vmatprep.subr.mxu0 0.0
    %374 = vmatpush2.msra.mxu0 0.0
    %375 = vmatprep.subr.mxu0 0.0
    %376 = vmatpush2.msra.mxu0 0.0
    %377 = vmatprep.subr.mxu0 0.0
    %378 = vmatpush2.msra.mxu0 0.0
    %379 = vmatprep.subr.mxu0 0.0
    %380 = vmatpush2.msra.mxu0 0.0
    %381 = vmatprep.subr.mxu0 0.0
    %382 = vmatpush2.msra.mxu0 0.0
    %383 = vmatprep.subr.mxu0 0.0
    %384 = vmatpush2.msra.mxu0 0.0
    %385 = vmatprep.subr.mxu0 0.0
    %386 = vmatpush2.msra.mxu0 0.0
    %387 = vmatprep.subr.mxu0 0.0
    %388 = vmatpush2.msra.mxu0 0.0
    %389 = vmatprep.subr.mxu0 0.0
    %390 = vmatpush2.msra.mxu0 0.0
    %391 = vmatprep.subr.mxu0 0.0
    %392 = vmatpush2.msra.mxu0 0.0
    %393 = vmatprep.mubr.f32.mxu0 0.0
    %394 = vmatmul.mubr.f32.gmra.mxu0 %v327
    %v395 = vpop.f32.mrf.mxu0
    %v396 = vadd.f32 0.0, %v395
    %v397 = vpop.f32.mrf.mxu0
    %398 = vdwg.mxu0
    %v399 = vadd.f32 %v143, %v396
    %v400 = vtanh.pop %v399
    %v402 = vsel %vm175, %v400, 0
    %404 = vmatprep.subr.mxu0 0.0
    %405 = vmatpush1.msra.mxu0 0.0
    %406 = vmatprep.subr.mxu0 0.0
    %407 = vmatpush1.msra.mxu0 0.0
    %408 = vmatprep.subr.mxu0 0.0
    %409 = vmatpush1.msra.mxu0 0.0
    %410 = vmatprep.subr.mxu0 0.0
    %411 = vmatpush1.msra.mxu0 0.0
    %412 = vmatprep.subr.mxu0 0.0
    %413 = vmatpush1.msra.mxu0 0.0
    %414 = vmatprep.subr.mxu0 0.0
    %415 = vmatpush1.msra.mxu0 0.0
    %416 = vmatprep.subr.mxu0 0.0
    %417 = vmatpush1.msra.mxu0 0.0
    %418 = vmatprep.subr.mxu0 0.0
    %419 = vmatpush1.msra.mxu0 0.0
    %420 = vmatprep.subr.mxu0 0.0
    %421 = vmatpush1.msra.mxu0 0.0
    %422 = vmatprep.subr.mxu0 0.0
    %423 = vmatpush1.msra.mxu0 0.0
    %424 = vmatprep.subr.mxu0 0.0
    %425 = vmatpush1.msra.mxu0 0.0
    %426 = vmatprep.subr.mxu0 0.0
    %427 = vmatpush1.msra.mxu0 0.0
    %428 = vmatprep.subr.mxu0 0.0
    %429 = vmatpush1.msra.mxu0 %v174
    %430 = vmatprep.subr.mxu0 0.0
    %431 = vmatpush1.msra.mxu0 %v173
    %432 = vmatprep.subr.mxu0 0.0
    %433 = vmatpush1.msra.mxu0 %v172
    %434 = vmatprep.subr.mxu0 0.0
    %435 = vmatpush1.msra.mxu0 %v171
    %436 = vmatprep.subr.mxu0 0.0
    %437 = vmatpush2.msra.mxu0 0.0
    %438 = vmatprep.subr.mxu0 0.0
    %439 = vmatpush2.msra.mxu0 0.0
    %440 = vmatprep.subr.mxu0 0.0
    %441 = vmatpush2.msra.mxu0 0.0
    %442 = vmatprep.subr.mxu0 0.0
    %443 = vmatpush2.msra.mxu0 0.0
    %444 = vmatprep.subr.mxu0 0.0
    %445 = vmatpush2.msra.mxu0 0.0
    %446 = vmatprep.subr.mxu0 0.0
    %447 = vmatpush2.msra.mxu0 0.0
    %448 = vmatprep.subr.mxu0 0.0
    %449 = vmatpush2.msra.mxu0 0.0
    %450 = vmatprep.subr.mxu0 0.0
    %451 = vmatpush2.msra.mxu0 0.0
    %452 = vmatprep.subr.mxu0 0.0
    %453 = vmatpush2.msra.mxu0 0.0
    %454 = vmatprep.subr.mxu0 0.0
    %455 = vmatpush2.msra.mxu0 0.0
    %456 = vmatprep.subr.mxu0 0.0
    %457 = vmatpush2.msra.mxu0 0.0
    %458 = vmatprep.subr.mxu0 0.0
    %459 = vmatpush2.msra.mxu0 0.0
    %460 = vmatprep.subr.mxu0 0.0
    %461 = vmatpush2.msra.mxu0 0.0
    %462 = vmatprep.subr.mxu0 0.0
    %463 = vmatpush2.msra.mxu0 0.0
    %464 = vmatprep.subr.mxu0 0.0
    %465 = vmatpush2.msra.mxu0 0.0
    %466 = vmatprep.subr.mxu0 0.0
    %467 = vmatpush2.msra.mxu0 0.0
    %468 = vmatprep.mubr.f32.mxu0 0.0
    %469 = vmatmul.mubr.f32.gmra.mxu0 %v402
    %v470 = vpop.f32.mrf.mxu0
    %v471 = vadd.f32 0.0, %v470
    %v472 = vpop.f32.mrf.mxu0
    %473 = vdwg.mxu0
    %v474 = vadd.f32 %v148, %v471
    %v475 = vtanh.pop %v474
    %v477 = vsel %vm175, %v475, 0
    %479 = vmatprep.subr.mxu0 0.0
    %480 = vmatpush1.msra.mxu0 0.0
    %481 = vmatprep.subr.mxu0 0.0
    %482 = vmatpush1.msra.mxu0 0.0
    %483 = vmatprep.subr.mxu0 0.0
    %484 = vmatpush1.msra.mxu0 0.0
    %485 = vmatprep.subr.mxu0 0.0
    %486 = vmatpush1.msra.mxu0 0.0
    %487 = vmatprep.subr.mxu0 0.0
    %488 = vmatpush1.msra.mxu0 0.0
    %489 = vmatprep.subr.mxu0 0.0
    %490 = vmatpush1.msra.mxu0 0.0
    %491 = vmatprep.subr.mxu0 0.0
    %492 = vmatpush1.msra.mxu0 0.0
    %493 = vmatprep.subr.mxu0 0.0
    %494 = vmatpush1.msra.mxu0 0.0
    %495 = vmatprep.subr.mxu0 0.0
    %496 = vmatpush1.msra.mxu0 0.0
    %497 = vmatprep.subr.mxu0 0.0
    %498 = vmatpush1.msra.mxu0 0.0
    %499 = vmatprep.subr.mxu0 0.0
    %500 = vmatpush1.msra.mxu0 0.0
    %501 = vmatprep.subr.mxu0 0.0
    %502 = vmatpush1.msra.mxu0 0.0
    %503 = vmatprep.subr.mxu0 0.0
    %504 = vmatpush1.msra.mxu0 %v174
    %505 = vmatprep.subr.mxu0 0.0
    %506 = vmatpush1.msra.mxu0 %v173
    %507 = vmatprep.subr.mxu0 0.0
    %508 = vmatpush1.msra.mxu0 %v172
    %509 = vmatprep.subr.mxu0 0.0
    %510 = vmatpush1.msra.mxu0 %v171
    %511 = vmatprep.subr.mxu0 0.0
    %512 = vmatpush2.msra.mxu0 0.0
    %513 = vmatprep.subr.mxu0 0.0
    %514 = vmatpush2.msra.mxu0 0.0
    %515 = vmatprep.subr.mxu0 0.0
    %516 = vmatpush2.msra.mxu0 0.0
    %517 = vmatprep.subr.mxu0 0.0
    %518 = vmatpush2.msra.mxu0 0.0
    %519 = vmatprep.subr.mxu0 0.0
    %520 = vmatpush2.msra.mxu0 0.0
    %521 = vmatprep.subr.mxu0 0.0
    %522 = vmatpush2.msra.mxu0 0.0
    %523 = vmatprep.subr.mxu0 0.0
    %524 = vmatpush2.msra.mxu0 0.0
    %525 = vmatprep.subr.mxu0 0.0
    %526 = vmatpush2.msra.mxu0 0.0
    %527 = vmatprep.subr.mxu0 0.0
    %528 = vmatpush2.msra.mxu0 0.0
    %529 = vmatprep.subr.mxu0 0.0
    %530 = vmatpush2.msra.mxu0 0.0
    %531 = vmatprep.subr.mxu0 0.0
    %532 = vmatpush2.msra.mxu0 0.0
    %533 = vmatprep.subr.mxu0 0.0
    %534 = vmatpush2.msra.mxu0 0.0
    %535 = vmatprep.subr.mxu0 0.0
    %536 = vmatpush2.msra.mxu0 0.0
    %537 = vmatprep.subr.mxu0 0.0
    %538 = vmatpush2.msra.mxu0 0.0
    %539 = vmatprep.subr.mxu0 0.0
    %540 = vmatpush2.msra.mxu0 0.0
    %541 = vmatprep.subr.mxu0 0.0
    %542 = vmatpush2.msra.mxu0 0.0
    %543 = vmatprep.mubr.f32.mxu0 0.0
    %544 = vmatmul.mubr.f32.gmra.mxu0 %v477
    %v545 = vpop.f32.mrf.mxu0
    %v546 = vadd.f32 0.0, %v545
    %v547 = vpop.f32.mrf.mxu0
    %548 = vdwg.mxu0
    %v549 = vadd.f32 %v153, %v546
    %v550 = vtanh.pop %v549
    %v552 = vsel %vm175, %v550, 0
    %554 = vmatprep.subr.mxu0 0.0
    %555 = vmatpush1.msra.mxu0 0.0
    %556 = vmatprep.subr.mxu0 0.0
    %557 = vmatpush1.msra.mxu0 0.0
    %558 = vmatprep.subr.mxu0 0.0
    %559 = vmatpush1.msra.mxu0 0.0
    %560 = vmatprep.subr.mxu0 0.0
    %561 = vmatpush1.msra.mxu0 0.0
    %562 = vmatprep.subr.mxu0 0.0
    %563 = vmatpush1.msra.mxu0 0.0
    %564 = vmatprep.subr.mxu0 0.0
    %565 = vmatpush1.msra.mxu0 0.0
    %566 = vmatprep.subr.mxu0 0.0
    %567 = vmatpush1.msra.mxu0 0.0
    %568 = vmatprep.subr.mxu0 0.0
    %569 = vmatpush1.msra.mxu0 0.0
    %570 = vmatprep.subr.mxu0 0.0
    %571 = vmatpush1.msra.mxu0 0.0
    %572 = vmatprep.subr.mxu0 0.0
    %573 = vmatpush1.msra.mxu0 0.0
    %574 = vmatprep.subr.mxu0 0.0
    %575 = vmatpush1.msra.mxu0 0.0
    %576 = vmatprep.subr.mxu0 0.0
    %577 = vmatpush1.msra.mxu0 0.0
    %578 = vmatprep.subr.mxu0 0.0
    %579 = vmatpush1.msra.mxu0 %v174
    %580 = vmatprep.subr.mxu0 0.0
    %581 = vmatpush1.msra.mxu0 %v173
    %582 = vmatprep.subr.mxu0 0.0
    %583 = vmatpush1.msra.mxu0 %v172
    %584 = vmatprep.subr.mxu0 0.0
    %585 = vmatpush1.msra.mxu0 %v171
    %586 = vmatprep.subr.mxu0 0.0
    %587 = vmatpush2.msra.mxu0 0.0
    %588 = vmatprep.subr.mxu0 0.0
    %589 = vmatpush2.msra.mxu0 0.0
    %590 = vmatprep.subr.mxu0 0.0
    %591 = vmatpush2.msra.mxu0 0.0
    %592 = vmatprep.subr.mxu0 0.0
    %593 = vmatpush2.msra.mxu0 0.0
    %594 = vmatprep.subr.mxu0 0.0
    %595 = vmatpush2.msra.mxu0 0.0
    %596 = vmatprep.subr.mxu0 0.0
    %597 = vmatpush2.msra.mxu0 0.0
    %598 = vmatprep.subr.mxu0 0.0
    %599 = vmatpush2.msra.mxu0 0.0
    %600 = vmatprep.subr.mxu0 0.0
    %601 = vmatpush2.msra.mxu0 0.0
    %602 = vmatprep.subr.mxu0 0.0
    %603 = vmatpush2.msra.mxu0 0.0
    %604 = vmatprep.subr.mxu0 0.0
    %605 = vmatpush2.msra.mxu0 0.0
    %606 = vmatprep.subr.mxu0 0.0
    %607 = vmatpush2.msra.mxu0 0.0
    %608 = vmatprep.subr.mxu0 0.0
    %609 = vmatpush2.msra.mxu0 0.0
    %610 = vmatprep.subr.mxu0 0.0
    %611 = vmatpush2.msra.mxu0 0.0
    %612 = vmatprep.subr.mxu0 0.0
    %613 = vmatpush2.msra.mxu0 0.0
    %614 = vmatprep.subr.mxu0 0.0
    %615 = vmatpush2.msra.mxu0 0.0
    %616 = vmatprep.subr.mxu0 0.0
    %617 = vmatpush2.msra.mxu0 0.0
    %618 = vmatprep.mubr.f32.mxu0 0.0
    %619 = vmatmul.mubr.f32.gmra.mxu0 %v552
    %v620 = vpop.f32.mrf.mxu0
    %v621 = vadd.f32 0.0, %v620
    %v622 = vpop.f32.mrf.mxu0
    %623 = vdwg.mxu0
    %v624 = vadd.f32 %v158, %v621
    %v625 = vtanh.pop %v624
    %v627 = vsel %vm175, %v625, 0
    %629 = vmatprep.subr.mxu0 0.0
    %630 = vmatpush1.msra.mxu0 0.0
    %631 = vmatprep.subr.mxu0 0.0
    %632 = vmatpush1.msra.mxu0 0.0
    %633 = vmatprep.subr.mxu0 0.0
    %634 = vmatpush1.msra.mxu0 0.0
    %635 = vmatprep.subr.mxu0 0.0
    %636 = vmatpush1.msra.mxu0 0.0
    %637 = vmatprep.subr.mxu0 0.0
    %638 = vmatpush1.msra.mxu0 0.0
    %639 = vmatprep.subr.mxu0 0.0
    %640 = vmatpush1.msra.mxu0 0.0
    %641 = vmatprep.subr.mxu0 0.0
    %642 = vmatpush1.msra.mxu0 0.0
    %643 = vmatprep.subr.mxu0 0.0
    %644 = vmatpush1.msra.mxu0 0.0
    %645 = vmatprep.subr.mxu0 0.0
    %646 = vmatpush1.msra.mxu0 0.0
    %647 = vmatprep.subr.mxu0 0.0
    %648 = vmatpush1.msra.mxu0 0.0
    %649 = vmatprep.subr.mxu0 0.0
    %650 = vmatpush1.msra.mxu0 0.0
    %651 = vmatprep.subr.mxu0 0.0
    %652 = vmatpush1.msra.mxu0 0.0
    %653 = vmatprep.subr.mxu0 0.0
    %654 = vmatpush1.msra.mxu0 %v174
    %655 = vmatprep.subr.mxu0 0.0
    %656 = vmatpush1.msra.mxu0 %v173
    %657 = vmatprep.subr.mxu0 0.0
    %658 = vmatpush1.msra.mxu0 %v172
    %659 = vmatprep.subr.mxu0 0.0
    %660 = vmatpush1.msra.mxu0 %v171
    %661 = vmatprep.subr.mxu0 0.0
    %662 = vmatpush2.msra.mxu0 0.0
    %663 = vmatprep.subr.mxu0 0.0
    %664 = vmatpush2.msra.mxu0 0.0
    %665 = vmatprep.subr.mxu0 0.0
    %666 = vmatpush2.msra.mxu0 0.0
    %667 = vmatprep.subr.mxu0 0.0
    %668 = vmatpush2.msra.mxu0 0.0
    %669 = vmatprep.subr.mxu0 0.0
    %670 = vmatpush2.msra.mxu0 0.0
    %671 = vmatprep.subr.mxu0 0.0
    %672 = vmatpush2.msra.mxu0 0.0
    %673 = vmatprep.subr.mxu0 0.0
    %674 = vmatpush2.msra.mxu0 0.0
    %675 = vmatprep.subr.mxu0 0.0
    %676 = vmatpush2.msra.mxu0 0.0
    %677 = vmatprep.subr.mxu0 0.0
    %678 = vmatpush2.msra.mxu0 0.0
    %679 = vmatprep.subr.mxu0 0.0
    %680 = vmatpush2.msra.mxu0 0.0
    %681 = vmatprep.subr.mxu0 0.0
    %682 = vmatpush2.msra.mxu0 0.0
    %683 = vmatprep.subr.mxu0 0.0
    %684 = vmatpush2.msra.mxu0 0.0
    %685 = vmatprep.subr.mxu0 0.0
    %686 = vmatpush2.msra.mxu0 0.0
    %687 = vmatprep.subr.mxu0 0.0
    %688 = vmatpush2.msra.mxu0 0.0
    %689 = vmatprep.subr.mxu0 0.0
    %690 = vmatpush2.msra.mxu0 0.0
    %691 = vmatprep.subr.mxu0 0.0
    %692 = vmatpush2.msra.mxu0 0.0
    %693 = vmatprep.mubr.f32.mxu0 0.0
    %694 = vmatmul.mubr.f32.gmra.mxu0 %v627
    %v695 = vpop.f32.mrf.mxu0
    %v696 = vadd.f32 0.0, %v695
    %v697 = vpop.f32.mrf.mxu0
    %698 = vdwg.mxu0
    %v699 = vadd.f32 %v163, %v696
    %v700 = vtanh.pop %v699
    %v702 = vsel %vm175, %v700, 0
    %704 = vmatprep.subr.mxu0 0.0
    %705 = vmatpush1.msra.mxu0 0.0
    %706 = vmatprep.subr.mxu0 0.0
    %707 = vmatpush1.msra.mxu0 0.0
    %708 = vmatprep.subr.mxu0 0.0
    %709 = vmatpush1.msra.mxu0 0.0
    %710 = vmatprep.subr.mxu0 0.0
    %711 = vmatpush1.msra.mxu0 0.0
    %712 = vmatprep.subr.mxu0 0.0
    %713 = vmatpush1.msra.mxu0 0.0
    %714 = vmatprep.subr.mxu0 0.0
    %715 = vmatpush1.msra.mxu0 0.0
    %716 = vmatprep.subr.mxu0 0.0
    %717 = vmatpush1.msra.mxu0 0.0
    %718 = vmatprep.subr.mxu0 0.0
    %719 = vmatpush1.msra.mxu0 0.0
    %720 = vmatprep.subr.mxu0 0.0
    %721 = vmatpush1.msra.mxu0 0.0
    %722 = vmatprep.subr.mxu0 0.0
    %723 = vmatpush1.msra.mxu0 0.0
    %724 = vmatprep.subr.mxu0 0.0
    %725 = vmatpush1.msra.mxu0 0.0
    %726 = vmatprep.subr.mxu0 0.0
    %727 = vmatpush1.msra.mxu0 0.0
    %728 = vmatprep.subr.mxu0 0.0
    %729 = vmatpush1.msra.mxu0 %v174
    %730 = vmatprep.subr.mxu0 0.0
    %731 = vmatpush1.msra.mxu0 %v173
    %732 = vmatprep.subr.mxu0 0.0
    %733 = vmatpush1.msra.mxu0 %v172
    %734 = vmatprep.subr.mxu0 0.0
    %735 = vmatpush1.msra.mxu0 %v171
    %736 = vmatprep.subr.mxu0 0.0
    %737 = vmatpush2.msra.mxu0 0.0
    %738 = vmatprep.subr.mxu0 0.0
    %739 = vmatpush2.msra.mxu0 0.0
    %740 = vmatprep.subr.mxu0 0.0
    %741 = vmatpush2.msra.mxu0 0.0
    %742 = vmatprep.subr.mxu0 0.0
    %743 = vmatpush2.msra.mxu0 0.0
    %744 = vmatprep.subr.mxu0 0.0
    %745 = vmatpush2.msra.mxu0 0.0
    %746 = vmatprep.subr.mxu0 0.0
    %747 = vmatpush2.msra.mxu0 0.0
    %748 = vmatprep.subr.mxu0 0.0
    %749 = vmatpush2.msra.mxu0 0.0
    %750 = vmatprep.subr.mxu0 0.0
    %751 = vmatpush2.msra.mxu0 0.0
    %752 = vmatprep.subr.mxu0 0.0
    %753 = vmatpush2.msra.mxu0 0.0
    %754 = vmatprep.subr.mxu0 0.0
    %755 = vmatpush2.msra.mxu0 0.0
    %756 = vmatprep.subr.mxu0 0.0
    %757 = vmatpush2.msra.mxu0 0.0
    %758 = vmatprep.subr.mxu0 0.0
    %759 = vmatpush2.msra.mxu0 0.0
    %760 = vmatprep.subr.mxu0 0.0
    %761 = vmatpush2.msra.mxu0 0.0
    %762 = vmatprep.subr.mxu0 0.0
    %763 = vmatpush2.msra.mxu0 0.0
    %764 = vmatprep.subr.mxu0 0.0
    %765 = vmatpush2.msra.mxu0 0.0
    %766 = vmatprep.subr.mxu0 0.0
    %767 = vmatpush2.msra.mxu0 0.0
    %768 = vmatprep.mubr.f32.mxu0 0.0
    %769 = vmatmul.mubr.f32.gmra.mxu0 %v702
    %v770 = vpop.f32.mrf.mxu0
    %v771 = vadd.f32 0.0, %v770
    %v772 = vpop.f32.mrf.mxu0
    %773 = vdwg.mxu0
    %v774 = vadd.f32 %v168, %v771
    %v775 = vtanh.pop %v774
    %v776 = vld [vmem:[%s4] sm:$0xff]
    %v777 = vld [vmem:[%s4 + $0x8] sm:$0xff]
    %v778 = vld [vmem:[%s4 + $0x10] sm:$0xff]
    %v779 = vld [vmem:[%s4 + $0x18] sm:$0xff]
    %v780 = vld [vmem:[%s5] sm:$0x1]
    %v782 = vlaneseq
    %v783 = vshrl.u32 %v782, 7
    %v784 = vsub.s32 0, %v783
    %v785 = vrot.slane %v780, %v784
    %v788 = vsel %vm175, %v775, 0
    %790 = vmatprep.subr.mxu0 0.0
    %791 = vmatpush1.msra.mxu0 0.0
    %792 = vmatprep.subr.mxu0 0.0
    %793 = vmatpush1.msra.mxu0 0.0
    %794 = vmatprep.subr.mxu0 0.0
    %795 = vmatpush1.msra.mxu0 0.0
    %796 = vmatprep.subr.mxu0 0.0
    %797 = vmatpush1.msra.mxu0 0.0
    %798 = vmatprep.subr.mxu0 0.0
    %799 = vmatpush1.msra.mxu0 0.0
    %800 = vmatprep.subr.mxu0 0.0
    %801 = vmatpush1.msra.mxu0 0.0
    %802 = vmatprep.subr.mxu0 0.0
    %803 = vmatpush1.msra.mxu0 0.0
    %804 = vmatprep.subr.mxu0 0.0
    %805 = vmatpush1.msra.mxu0 0.0
    %806 = vmatprep.subr.mxu0 0.0
    %807 = vmatpush1.msra.mxu0 0.0
    %808 = vmatprep.subr.mxu0 0.0
    %809 = vmatpush1.msra.mxu0 0.0
    %810 = vmatprep.subr.mxu0 0.0
    %811 = vmatpush1.msra.mxu0 0.0
    %812 = vmatprep.subr.mxu0 0.0
    %813 = vmatpush1.msra.mxu0 0.0
    %814 = vmatprep.subr.mxu0 0.0
    %815 = vmatpush1.msra.mxu0 %v779
    %816 = vmatprep.subr.mxu0 0.0
    %817 = vmatpush1.msra.mxu0 %v778
    %818 = vmatprep.subr.mxu0 0.0
    %819 = vmatpush1.msra.mxu0 %v777
    %820 = vmatprep.subr.mxu0 0.0
    %821 = vmatpush1.msra.mxu0 %v776
    %822 = vmatprep.subr.mxu0 0.0
    %823 = vmatpush2.msra.mxu0 0.0
    %824 = vmatprep.subr.mxu0 0.0
    %825 = vmatpush2.msra.mxu0 0.0
    %826 = vmatprep.subr.mxu0 0.0
    %827 = vmatpush2.msra.mxu0 0.0
    %828 = vmatprep.subr.mxu0 0.0
    %829 = vmatpush2.msra.mxu0 0.0
    %830 = vmatprep.subr.mxu0 0.0
    %831 = vmatpush2.msra.mxu0 0.0
    %832 = vmatprep.subr.mxu0 0.0
    %833 = vmatpush2.msra.mxu0 0.0
    %834 = vmatprep.subr.mxu0 0.0
    %835 = vmatpush2.msra.mxu0 0.0
    %836 = vmatprep.subr.mxu0 0.0
    %837 = vmatpush2.msra.mxu0 0.0
    %838 = vmatprep.subr.mxu0 0.0
    %839 = vmatpush2.msra.mxu0 0.0
    %840 = vmatprep.subr.mxu0 0.0
    %841 = vmatpush2.msra.mxu0 0.0
    %842 = vmatprep.subr.mxu0 0.0
    %843 = vmatpush2.msra.mxu0 0.0
    %844 = vmatprep.subr.mxu0 0.0
    %845 = vmatpush2.msra.mxu0 0.0
    %846 = vmatprep.subr.mxu0 0.0
    %847 = vmatpush2.msra.mxu0 0.0
    %848 = vmatprep.subr.mxu0 0.0
    %849 = vmatpush2.msra.mxu0 0.0
    %850 = vmatprep.subr.mxu0 0.0
    %851 = vmatpush2.msra.mxu0 0.0
    %852 = vmatprep.subr.mxu0 0.0
    %853 = vmatpush2.msra.mxu0 0.0
    %854 = vmatprep.mubr.f32.mxu0 0.0
    %855 = vmatmul.mubr.f32.gmra.mxu0 %v788
    %v856 = vpop.f32.mrf.mxu0
    %v857 = vadd.f32 %v785, %v856
    %v858 = vpop.f32.mrf.mxu0
    %859 = vdwg.mxu0
    %860 = vmax.xlane.f32.xlu0 %v857
    %v861 = vpop.xlane.xlu0 %860
    %v862 = vsub.f32 %v857, %v861
    %v863 = vmul.f32 %v862, 1.442695
    %v864 = vpow.pop %v863
    %865 = vadd.xlane.f32.xlu0 %v864
    %v866 = vpop.xlane.xlu0 %865
    %v867 = vrcp.pop %v866
    %v868 = vmul.f32 %v864, %v867
    %869 = vst [vmem:[#allocation2] sm:$0xff] %v868
    // Predicated region
    $region26: #{tpu_custom_call.1} parent=1 // pred_check
      _
    $region27: #{tpu_custom_call.1} parent=1 // pred_check_branch
      %871 = sbr.rel (0) target = $region29
    $region28: #{tpu_custom_call.1} parent=1 // pred_region
      %s873 = ssub.s32 128, 128
      %874 = vsyncadd [#allocation3], %s873
      %s876 = sshll.u32 [#allocation2], 4
      %s877 = int_to_ptr.vmem [resolvable:$true] %s876
      %879 = dma.vmem_to_hbm [thread:$0]  %s877, 128, %s6, [#allocation3]
    $region29: #{tpu_custom_call.1} parent=1 // pred_fallthru
      _
    // Predicated region
    $region30: #{tpu_custom_call.1} parent=1 // pred_check
      _
    $region31: #{tpu_custom_call.1} parent=1 // pred_check_branch
      %881 = sbr.rel (0) target = $region33
    $region32: #{tpu_custom_call.1} parent=1 // pred_region
      %882 = dma.done [#allocation3], 128
    $region33: #{tpu_custom_call.1} parent=1 // pred_fallthru
      _
    %883 = vsyncpa [#allocation3], 1

</llo_original>
